<compile_context>
chip_gen: v5e
topology: v5e:2x2
jax: 0.10.0
libtpu: 0.0.40
codegen_flags: <defaults>
</compile_context>

<pallas_src>
import functools

import jax
import jax.numpy as jnp
from jax.experimental import pallas as pl
from jax.experimental.pallas import tpu as pltpu

_LANE = 128
_SUBLANE = 8

try:  # physical VMEM of the chip we are running on (v5e/v6e: 128 MiB, v7x: 64 MiB)
    _VMEM_PHYS_BYTES = int(pltpu.get_tpu_info().vmem_capacity_bytes)
except Exception:  # pragma: no cover - conservative default = v7x
    _VMEM_PHYS_BYTES = 64 * 1024 * 1024


def _round_up(n, m):
    return ((n + m - 1) // m) * m


# ----------------------------------------------------------------------------
# Kernel bodies: chained (matmul + bias + tanh) over all layers.  Intermediate
# activations stay as in-kernel values (vregs/VMEM) — they never touch HBM.
# ----------------------------------------------------------------------------
def _make_kernel_stacked(n_layers, dims_pad, compute_dtype):
    # refs: x_ref (TB, Dp), b_ref (L, Dp), w_ref (L, Dp, Dp), o_ref (TB, Dp)
    def kernel(x_ref, b_ref, w_ref, o_ref):
        h = x_ref[...]
        for l in range(n_layers):
            acc = jnp.dot(h.astype(compute_dtype), w_ref[l],
                          preferred_element_type=jnp.float32)
            bias_row = b_ref[l, :]
            acc = acc + bias_row[: dims_pad[l + 1]]   # f32 bias row broadcast
            h = jnp.tanh(acc)                         # tanh(0)=0 keeps feature padding exact
        o_ref[...] = h.astype(o_ref.dtype)

    return kernel


def _make_kernel_unstacked(n_layers, dims_pad, compute_dtype):
    # refs: (x_ref, b_ref, w0_ref, ..., w{L-1}_ref, o_ref)
    def kernel(*refs):
        x_ref, b_ref, o_ref = refs[0], refs[1], refs[-1]
        h = x_ref[...]
        for l in range(n_layers):
            w_ref = refs[2 + l]
            acc = jnp.dot(h.astype(compute_dtype), w_ref[...],
                          preferred_element_type=jnp.float32)
            bias_row = b_ref[l, :]
            acc = acc + bias_row[: dims_pad[l + 1]]
            h = jnp.tanh(acc)
        o_ref[...] = h.astype(o_ref.dtype)

    return kernel


# ----------------------------------------------------------------------------
# Fused forward (traced): single pallas_call over batch tiles.
# ----------------------------------------------------------------------------
def _fused_mlp_forward(x, weights, biases, *, dims, dims_pad, stacked,
                       use_bf16, tile_b, single_buffer):
    B = x.shape[0]
    n_layers = len(dims) - 1
    compute_dtype = jnp.bfloat16 if use_bf16 else jnp.float32

    # Batch tiling: sublane-aligned; capped at 256 (fills the 256-tall MXU,
    # keeps the f32 accumulator within the vreg file); >=2 tiles whenever the
    # batch allows so both TensorCores on v7x get work.
    B_pad8 = _round_up(max(B, 1), _SUBLANE)
    if tile_b is None:
        tile_b = min(256, B_pad8)
        if B_pad8 >= 2 * _SUBLANE:
            tile_b = min(tile_b, _round_up(pl.cdiv(B_pad8, 2), _SUBLANE))
    tile_b = max(_SUBLANE, _round_up(int(tile_b), _SUBLANE))
    B_pad = _round_up(B_pad8, tile_b)
    grid = (B_pad // tile_b,)

    # Pad input to (B_pad, D0p) in the compute dtype.  Padded batch rows turn
    # into tanh(bias) garbage downstream but are sliced off at the end.
    x_pad = (jnp.zeros((B_pad, dims_pad[0]), compute_dtype)
             .at[:B, :dims[0]].set(x.astype(compute_dtype)))

    def _const_spec(shape):
        idx_map = lambda i, _r=len(shape): (0,) * _r
        if single_buffer:
            # Constant-index block: data never changes across grid steps, so a
            # single resident buffer suffices (halves resident VMEM).
            return pl.BlockSpec(shape, idx_map, pipeline_mode=pl.Buffered(1))
        return pl.BlockSpec(shape, idx_map)

    flat_inputs = [x_pad, biases]
    in_specs = [
        pl.BlockSpec((tile_b, dims_pad[0]), lambda i: (i, 0)),
        _const_spec(biases.shape),                       # (L, max_Dp) f32, resident
    ]
    if stacked:
        flat_inputs.append(weights)                      # (L, Dp, Dp), resident
        in_specs.append(_const_spec(weights.shape))
    else:
        for w in weights:                                # per-layer (Dlp, Dl+1p)
            flat_inputs.append(w)
            in_specs.append(_const_spec(w.shape))
    out_spec = pl.BlockSpec((tile_b, dims_pad[-1]), lambda i: (i, 0))

    # VMEM budget: double-buffered x/out tiles + (single- or double-buffered)
    # resident weights/biases + live f32 activation+accumulator scratch.
    max_dp = max(dims_pad)
    buf_w = 1 if single_buffer else 2
    est = 2 * tile_b * (dims_pad[0] * jnp.dtype(compute_dtype).itemsize
                        + dims_pad[-1] * jnp.dtype(x.dtype).itemsize)
    est += buf_w * sum(int(a.size) * a.dtype.itemsize for a in flat_inputs[1:])
    est += 2 * tile_b * max_dp * 4          # f32 activation + accumulator
    vmem_cap = int(_VMEM_PHYS_BYTES * 0.85)  # never ask for more than physical VMEM
    vmem_limit = min(int(est * 1.5), vmem_cap) if est > 8 * 1024 * 1024 else None
    # TODO(synk): when resident padded-weight bytes exceed ~40 MiB (v7x) /
    # ~80 MiB (v5e/v6e), switch to layer-streamed weights (pl.ANY +
    # make_async_copy double-buffer, or pltpu.emit_pipeline over K) with an
    # f32 accumulator; not needed at GA-NN sizes.

    kernel = (_make_kernel_stacked if stacked else _make_kernel_unstacked)(
        n_layers, dims_pad, compute_dtype)

    out_pad = pl.pallas_call(
        kernel,
        out_shape=jax.ShapeDtypeStruct((B_pad, dims_pad[-1]), x.dtype),
        grid_spec=pltpu.PrefetchScalarGridSpec(
            num_scalar_prefetch=0,
            grid=grid,
            in_specs=in_specs,
            out_specs=out_spec,
        ),
        compiler_params=pltpu.CompilerParams(
            dimension_semantics=("parallel",),   # batch tiles shard across TCs (v7x)
            vmem_limit_bytes=vmem_limit,
        ),
    )(*flat_inputs)

    return out_pad[:B, :dims[-1]]


@functools.partial(jax.jit, static_argnames=(
    "dims", "dims_pad", "stacked", "use_bf16", "tile_b", "single_buffer"))
def _forward_jit(x, weights, biases, *, dims, dims_pad, stacked, use_bf16,
                 tile_b, single_buffer):
    return _fused_mlp_forward(x, weights, biases, dims=dims, dims_pad=dims_pad,
                              stacked=stacked, use_bf16=use_bf16, tile_b=tile_b,
                              single_buffer=single_buffer)


# ----------------------------------------------------------------------------
# User-facing wrapper: pads / casts parameters ONCE at construction (hoisted
# out of the per-call jitted path), then every forward is one pallas_call.
# ----------------------------------------------------------------------------
class PallasNeuralNetwork:
    """Pallas port of the torch NeuralNetwork: x = tanh(Linear_l(x)) for all l."""

    def __init__(self, params, *, use_bf16=True):
        self.use_bf16 = bool(use_bf16)
        compute_dtype = jnp.bfloat16 if self.use_bf16 else jnp.float32

        dims = [params[0][0].shape[0]] + [w.shape[1] for (w, _) in params]
        self.dims = tuple(int(d) for d in dims)
        self.dims_pad = tuple(_round_up(d, _LANE) for d in self.dims)
        n_layers = len(params)
        max_dp = max(self.dims_pad[1:])

        # Pack all biases into one (L, max_Dp) f32 operand; pad weights to
        # lane-dense (128-multiple) shapes in the compute dtype.
        b_stack = jnp.zeros((n_layers, max_dp), jnp.float32)
        w_list = []
        for l, (w, b) in enumerate(params):
            fi, fo = w.shape
            w_pad = (jnp.zeros((self.dims_pad[l], self.dims_pad[l + 1]), compute_dtype)
                     .at[:fi, :fo].set(w.astype(compute_dtype)))
            w_list.append(w_pad)
            b_stack = b_stack.at[l, :fo].set(b.astype(jnp.float32))
        self.biases = b_stack

        # If every padded width is identical (common GA-NN case: all pad to
        # 128), pack weights into a single (L, Dp, Dp) operand as well.
        self.stacked = len(set(self.dims_pad)) == 1
        self.weights = jnp.stack(w_list, axis=0) if self.stacked else tuple(w_list)

        # Try single-buffered resident weights first; downgrade once if this
        # jax/Mosaic build rejects pl.Buffered(1).
        self._single_buffer = True

    def __call__(self, x, tile_b=None):
        kwargs = dict(dims=self.dims, dims_pad=self.dims_pad, stacked=self.stacked,
                      use_bf16=self.use_bf16, tile_b=tile_b)
        if self._single_buffer:
            try:
                return _forward_jit(x, self.weights, self.biases,
                                    single_buffer=True, **kwargs)
            except Exception:
                self._single_buffer = False   # fall back to default buffering
        return _forward_jit(x, self.weights, self.biases,
                            single_buffer=False, **kwargs)


# ----------------------------------------------------------------------------
# Helpers: torch-like init + pure-JAX reference.
# ----------------------------------------------------------------------------
def init_params(nn_list, key):
    """Matches torch.nn.Linear default init: U(-1/sqrt(fan_in), 1/sqrt(fan_in))
    for both weight and bias.  Weights stored as (in, out)."""
    params = []
    for i in range(len(nn_list) - 1):
        fan_in, fan_out = nn_list[i], nn_list[i + 1]
        key, kw, kb = jax.random.split(key, 3)
        bound = 1.0 / jnp.sqrt(jnp.float32(fan_in))
        w = jax.random.uniform(kw, (fan_in, fan_out), jnp.float32,
                               minval=-bound, maxval=bound)
        b = jax.random.uniform(kb, (fan_out,), jnp.float32,
                               minval=-bound, maxval=bound)
        params.append((w, b))
    return params


def reference_forward(x, params):
    for w, b in params:
        x = jnp.tanh(x @ w + b)
    return x


if __name__ == "__main__":
    # nn_list = [input dim, hidden..., output dim]
    nn_list = [16, 32, 32, 8]
    batch = 8

    key = jax.random.PRNGKey(0)
    key, kx = jax.random.split(key)
    x = jax.random.normal(kx, (batch, nn_list[0]), jnp.float32)
    params = init_params(nn_list, key)

    ref = reference_forward(x, params)

    # f32-operand path: tight tolerance vs the pure-JAX reference.
    net_f32 = PallasNeuralNetwork(params, use_bf16=False)
    out_f32 = jax.block_until_ready(net_f32(x))
    assert out_f32.shape == (batch, nn_list[-1])
    assert jnp.allclose(out_f32, ref, atol=1e-5, rtol=1e-5), "f32 path mismatch"

    # Default path: bf16 MXU operands + f32 accumulation (looser tolerance).
    net = PallasNeuralNetwork(params)
    out = jax.block_until_ready(net(x))
    assert out.shape == (batch, nn_list[-1])
    assert jnp.allclose(out, ref, atol=5e-2, rtol=5e-2), "bf16 path mismatch"

    print("KERNEL_OK")
</pallas_src>

<mosaic_0001>
module attributes {stable_mosaic.version = 11 : i64} {
  func.func @kernel(%arg0: i32, %arg1: memref<8x128xf32, #tpu.memory_space<vmem>>, %arg2: memref<3x128xf32, #tpu.memory_space<vmem>>, %arg3: memref<3x128x128xf32, #tpu.memory_space<vmem>>, %arg4: memref<8x128xf32, #tpu.memory_space<vmem>>) attributes {dimension_semantics = [#tpu.dimension_semantics<parallel>], iteration_bounds = array<i64: 1>, scalar_prefetch = 0 : i64, scratch_operands = 0 : i64, tpu.core_type = #tpu.core_type<tc>, window_params = [{transform_indices = @transform_0, window_bounds = array<i64: 8, 128>}, {pipeline_mode = #tpu.pipeline_mode<synchronous>, transform_indices = @transform_1, window_bounds = array<i64: 3, 128>}, {pipeline_mode = #tpu.pipeline_mode<synchronous>, transform_indices = @transform_2, window_bounds = array<i64: 3, 128, 128>}, {transform_indices = @transform_3, window_bounds = array<i64: 8, 128>}]} {
    %c0 = arith.constant 0 : index
    %c0_0 = arith.constant 0 : index
    %0 = vector.load %arg1[%c0, %c0_0] : memref<8x128xf32, #tpu.memory_space<vmem>>, vector<8x128xf32>
    %c0_1 = arith.constant 0 : index
    %c0_2 = arith.constant 0 : index
    %c0_3 = arith.constant 0 : index
    %1 = vector.load %arg3[%c0_1, %c0_2, %c0_3] : memref<3x128x128xf32, #tpu.memory_space<vmem>>, vector<1x128x128xf32>
    %2 = vector.shape_cast %1 : vector<1x128x128xf32> to vector<128x128xf32>
    %cst = arith.constant dense<0.000000e+00> : vector<8x128xf32>
    %3 = tpu.matmul %0, %2, %cst {dimension_numbers = #tpu.dot_dimension_numbers<[1], [0], [0], [1], [0, 0, 1, 1], [], []>} : vector<8x128xf32>, vector<128x128xf32>, vector<8x128xf32> -> vector<8x128xf32>
    %c0_4 = arith.constant 0 : index
    %c0_5 = arith.constant 0 : index
    %4 = vector.load %arg2[%c0_4, %c0_5] : memref<3x128xf32, #tpu.memory_space<vmem>>, vector<1x128xf32>
    %5 = vector.shape_cast %4 : vector<1x128xf32> to vector<128xf32>
    %6 = vector.shape_cast %5 : vector<128xf32> to vector<1x128xf32>
    %7 = vector.broadcast %6 : vector<1x128xf32> to vector<8x128xf32>
    %8 = arith.addf %3, %7 : vector<8x128xf32>
    %9 = math.tanh %8 : vector<8x128xf32>
    %c1 = arith.constant 1 : index
    %c0_6 = arith.constant 0 : index
    %c0_7 = arith.constant 0 : index
    %10 = vector.load %arg3[%c1, %c0_6, %c0_7] : memref<3x128x128xf32, #tpu.memory_space<vmem>>, vector<1x128x128xf32>
    %11 = vector.shape_cast %10 : vector<1x128x128xf32> to vector<128x128xf32>
    %cst_8 = arith.constant dense<0.000000e+00> : vector<8x128xf32>
    %12 = tpu.matmul %9, %11, %cst_8 {dimension_numbers = #tpu.dot_dimension_numbers<[1], [0], [0], [1], [0, 0, 1, 1], [], []>} : vector<8x128xf32>, vector<128x128xf32>, vector<8x128xf32> -> vector<8x128xf32>
    %c1_9 = arith.constant 1 : index
    %c0_10 = arith.constant 0 : index
    %13 = vector.load %arg2[%c1_9, %c0_10] : memref<3x128xf32, #tpu.memory_space<vmem>>, vector<1x128xf32>
    %14 = vector.shape_cast %13 : vector<1x128xf32> to vector<128xf32>
    %15 = vector.shape_cast %14 : vector<128xf32> to vector<1x128xf32>
    %16 = vector.broadcast %15 : vector<1x128xf32> to vector<8x128xf32>
    %17 = arith.addf %12, %16 : vector<8x128xf32>
    %18 = math.tanh %17 : vector<8x128xf32>
    %c2 = arith.constant 2 : index
    %c0_11 = arith.constant 0 : index
    %c0_12 = arith.constant 0 : index
    %19 = vector.load %arg3[%c2, %c0_11, %c0_12] : memref<3x128x128xf32, #tpu.memory_space<vmem>>, vector<1x128x128xf32>
    %20 = vector.shape_cast %19 : vector<1x128x128xf32> to vector<128x128xf32>
    %cst_13 = arith.constant dense<0.000000e+00> : vector<8x128xf32>
    %21 = tpu.matmul %18, %20, %cst_13 {dimension_numbers = #tpu.dot_dimension_numbers<[1], [0], [0], [1], [0, 0, 1, 1], [], []>} : vector<8x128xf32>, vector<128x128xf32>, vector<8x128xf32> -> vector<8x128xf32>
    %c2_14 = arith.constant 2 : index
    %c0_15 = arith.constant 0 : index
    %22 = vector.load %arg2[%c2_14, %c0_15] : memref<3x128xf32, #tpu.memory_space<vmem>>, vector<1x128xf32>
    %23 = vector.shape_cast %22 : vector<1x128xf32> to vector<128xf32>
    %24 = vector.shape_cast %23 : vector<128xf32> to vector<1x128xf32>
    %25 = vector.broadcast %24 : vector<1x128xf32> to vector<8x128xf32>
    %26 = arith.addf %21, %25 : vector<8x128xf32>
    %27 = math.tanh %26 : vector<8x128xf32>
    %c0_16 = arith.constant 0 : index
    %c0_17 = arith.constant 0 : index
    %28 = vector.load %arg4[%c0_16, %c0_17] : memref<8x128xf32, #tpu.memory_space<vmem>>, vector<8x128xf32>
    tpu.vector_store %arg4[%c0_16, %c0_17], %27 {strides = array<i32>} : memref<8x128xf32, #tpu.memory_space<vmem>>, vector<8x128xf32>,
    return
  }
  func.func @transform_0(%arg0: i32) -> (i32, i32) {
    %c0_i32 = arith.constant 0 : i32
    %c0_i32_0 = arith.constant 0 : i32
    return %arg0, %c0_i32 : i32, i32
  }
  func.func @transform_1(%arg0: i32) -> (i32, i32) {
    %c0_i32 = arith.constant 0 : i32
    %c0_i32_0 = arith.constant 0 : i32
    %c0_i32_1 = arith.constant 0 : i32
    return %c0_i32, %c0_i32_0 : i32, i32
  }
  func.func @transform_2(%arg0: i32) -> (i32, i32, i32) {
    %c0_i32 = arith.constant 0 : i32
    %c0_i32_0 = arith.constant 0 : i32
    %c0_i32_1 = arith.constant 0 : i32
    %c0_i32_2 = arith.constant 0 : i32
    return %c0_i32, %c0_i32_0, %c0_i32_1 : i32, i32, i32
  }
  func.func @transform_3(%arg0: i32) -> (i32, i32) {
    %c0_i32 = arith.constant 0 : i32
    %c0_i32_0 = arith.constant 0 : i32
    return %arg0, %c0_i32 : i32, i32
  }
}

module attributes {stable_mosaic.version = 11 : i64} {
  func.func @kernel(%arg0: i32, %arg1: memref<8x128xf32, #tpu.memory_space<vmem>>, %arg2: memref<3x128xf32, #tpu.memory_space<vmem>>, %arg3: memref<3x128x128xf32, #tpu.memory_space<vmem>>, %arg4: memref<8x128xf32, #tpu.memory_space<vmem>>) attributes {dimension_semantics = [#tpu.dimension_semantics<parallel>], iteration_bounds = array<i64: 1>, scalar_prefetch = 0 : i64, scratch_operands = 0 : i64, tpu.core_type = #tpu.core_type<tc>, window_params = [{transform_indices = @transform_0, window_bounds = array<i64: 8, 128>}, {pipeline_mode = #tpu.pipeline_mode<synchronous>, transform_indices = @transform_1, window_bounds = array<i64: 3, 128>}, {pipeline_mode = #tpu.pipeline_mode<synchronous>, transform_indices = @transform_2, window_bounds = array<i64: 3, 128, 128>}, {transform_indices = @transform_3, window_bounds = array<i64: 8, 128>}]} {
    %c0 = arith.constant 0 : index
    %c0_0 = arith.constant 0 : index
    %0 = vector.load %arg1[%c0, %c0_0] : memref<8x128xf32, #tpu.memory_space<vmem>>, vector<8x128xf32>
    %c0_1 = arith.constant 0 : index
    %c0_2 = arith.constant 0 : index
    %c0_3 = arith.constant 0 : index
    %1 = vector.load %arg3[%c0_1, %c0_2, %c0_3] : memref<3x128x128xf32, #tpu.memory_space<vmem>>, vector<1x128x128xf32>
    %2 = vector.shape_cast %1 : vector<1x128x128xf32> to vector<128x128xf32>
    %cst = arith.constant dense<0.000000e+00> : vector<8x128xf32>
    %3 = tpu.matmul %0, %2, %cst {dimension_numbers = #tpu.dot_dimension_numbers<[1], [0], [0], [1], [0, 0, 1, 1], [], []>} : vector<8x128xf32>, vector<128x128xf32>, vector<8x128xf32> -> vector<8x128xf32>
    %c0_4 = arith.constant 0 : index
    %c0_5 = arith.constant 0 : index
    %4 = vector.load %arg2[%c0_4, %c0_5] : memref<3x128xf32, #tpu.memory_space<vmem>>, vector<1x128xf32>
    %5 = vector.shape_cast %4 : vector<1x128xf32> to vector<128xf32>
    %6 = vector.shape_cast %5 : vector<128xf32> to vector<1x128xf32>
    %7 = vector.broadcast %6 : vector<1x128xf32> to vector<8x128xf32>
    %8 = arith.addf %3, %7 : vector<8x128xf32>
    %9 = math.tanh %8 : vector<8x128xf32>
    %c1 = arith.constant 1 : index
    %c0_6 = arith.constant 0 : index
    %c0_7 = arith.constant 0 : index
    %10 = vector.load %arg3[%c1, %c0_6, %c0_7] : memref<3x128x128xf32, #tpu.memory_space<vmem>>, vector<1x128x128xf32>
    %11 = vector.shape_cast %10 : vector<1x128x128xf32> to vector<128x128xf32>
    %cst_8 = arith.constant dense<0.000000e+00> : vector<8x128xf32>
    %12 = tpu.matmul %9, %11, %cst_8 {dimension_numbers = #tpu.dot_dimension_numbers<[1], [0], [0], [1], [0, 0, 1, 1], [], []>} : vector<8x128xf32>, vector<128x128xf32>, vector<8x128xf32> -> vector<8x128xf32>
    %c1_9 = arith.constant 1 : index
    %c0_10 = arith.constant 0 : index
    %13 = vector.load %arg2[%c1_9, %c0_10] : memref<3x128xf32, #tpu.memory_space<vmem>>, vector<1x128xf32>
    %14 = vector.shape_cast %13 : vector<1x128xf32> to vector<128xf32>
    %15 = vector.shape_cast %14 : vector<128xf32> to vector<1x128xf32>
    %16 = vector.broadcast %15 : vector<1x128xf32> to vector<8x128xf32>
    %17 = arith.addf %12, %16 : vector<8x128xf32>
    %18 = math.tanh %17 : vector<8x128xf32>
    %c2 = arith.constant 2 : index
    %c0_11 = arith.constant 0 : index
    %c0_12 = arith.constant 0 : index
    %19 = vector.load %arg3[%c2, %c0_11, %c0_12] : memref<3x128x128xf32, #tpu.memory_space<vmem>>, vector<1x128x128xf32>
    %20 = vector.shape_cast %19 : vector<1x128x128xf32> to vector<128x128xf32>
    %cst_13 = arith.constant dense<0.000000e+00> : vector<8x128xf32>
    %21 = tpu.matmul %18, %20, %cst_13 {dimension_numbers = #tpu.dot_dimension_numbers<[1], [0], [0], [1], [0, 0, 1, 1], [], []>} : vector<8x128xf32>, vector<128x128xf32>, vector<8x128xf32> -> vector<8x128xf32>
    %c2_14 = arith.constant 2 : index
    %c0_15 = arith.constant 0 : index
    %22 = vector.load %arg2[%c2_14, %c0_15] : memref<3x128xf32, #tpu.memory_space<vmem>>, vector<1x128xf32>
    %23 = vector.shape_cast %22 : vector<1x128xf32> to vector<128xf32>
    %24 = vector.shape_cast %23 : vector<128xf32> to vector<1x128xf32>
    %25 = vector.broadcast %24 : vector<1x128xf32> to vector<8x128xf32>
    %26 = arith.addf %21, %25 : vector<8x128xf32>
    %27 = math.tanh %26 : vector<8x128xf32>
    %c0_16 = arith.constant 0 : index
    %c0_17 = arith.constant 0 : index
    %28 = vector.load %arg4[%c0_16, %c0_17] : memref<8x128xf32, #tpu.memory_space<vmem>>, vector<8x128xf32>
    tpu.vector_store %arg4[%c0_16, %c0_17], %27 {strides = array<i32>} : memref<8x128xf32, #tpu.memory_space<vmem>>, vector<8x128xf32>,
    return
  }
  func.func @transform_0(%arg0: i32) -> (i32, i32) {
    %c0_i32 = arith.constant 0 : i32
    %c0_i32_0 = arith.constant 0 : i32
    return %arg0, %c0_i32 : i32, i32
  }
  func.func @transform_1(%arg0: i32) -> (i32, i32) {
    %c0_i32 = arith.constant 0 : i32
    %c0_i32_0 = arith.constant 0 : i32
    %c0_i32_1 = arith.constant 0 : i32
    return %c0_i32, %c0_i32_0 : i32, i32
  }
  func.func @transform_2(%arg0: i32) -> (i32, i32, i32) {
    %c0_i32 = arith.constant 0 : i32
    %c0_i32_0 = arith.constant 0 : i32
    %c0_i32_1 = arith.constant 0 : i32
    %c0_i32_2 = arith.constant 0 : i32
    return %c0_i32, %c0_i32_0, %c0_i32_1 : i32, i32, i32
  }
  func.func @transform_3(%arg0: i32) -> (i32, i32) {
    %c0_i32 = arith.constant 0 : i32
    %c0_i32_0 = arith.constant 0 : i32
    return %arg0, %c0_i32 : i32, i32
  }
}

</mosaic_0001>

<llo_original>
// kernel: _forward_jit.1
$region0: #{_forward_jit.1}
  #allocation0 [shape = 'u32[]', space=smem, size = 0x4, offset = 0x4, fixed_abs, tag = 'smem constant byte address 0x4 - core index']
  #allocation1 [shape = 'u32[72,128]{1,0:T(1,128)}', space=vmem, size = 0x9000, scoped, tag = 'internal scratch']
  %s0 = inlined_call_operand.vmem [shape: f32[8,128], index: 0, kind: input, shape index: {}]
  %s1 = inlined_call_operand.vmem [shape: f32[3,128], index: 1, kind: input, shape index: {}]
  %s2 = inlined_call_operand.hbm [shape: f32[3,128,128], index: 2, kind: input, shape index: {}]
  %s3 = inlined_call_operand.hbm [shape: f32[8,128], index: 3, kind: output, shape index: {}]
  %s4 = sld [smem:[#allocation0]]
  $region26: #{_forward_jit.1} parent=0
    _
  %s6 = ssub.s32 1, %s4
  %s7 = scalar_select 0, %s6, %s4
  $region1: #{_forward_jit.1} parent=0
    #allocation2 [shape = 'u8[196608]{0}', space=vmem, size = 0x30000, scoped, tag = 'input window, operand 2, single buffered']
    #allocation3 [shape = 's32[1]{0}', space=sflag, size = 0x4, scoped, tag = 'scoped memory for _forward_jit.1']
    #allocation4 [shape = 's32[1]{0}', space=sflag, size = 0x4, scoped, tag = 'scoped memory for _forward_jit.1']
    #allocation5 [shape = 'u8[4096]{0}', space=vmem, size = 0x1000, scoped, tag = 'output window, operand 0, single buffered']
    %8 = vsyncpa [#allocation3], 0
    %9 = vsyncpa [#allocation4], 0
    // Predicated region
    $region2: #{_forward_jit.1} parent=1 // pred_check
      _
    $region3: #{_forward_jit.1} parent=1 // pred_check_branch
      %11 = sbr.rel (0) target = $region5
    $region4: #{_forward_jit.1} parent=1 // pred_region
      _
    $region5: #{_forward_jit.1} parent=1 // pred_fallthru
      _
    // Predicated region
    $region6: #{_forward_jit.1} parent=1 // pred_check
      _
    $region7: #{_forward_jit.1} parent=1 // pred_check_branch
      %13 = sbr.rel (0) target = $region9
    $region8: #{_forward_jit.1} parent=1 // pred_region
      _
    $region9: #{_forward_jit.1} parent=1 // pred_fallthru
      _
    // Predicated region
    $region10: #{_forward_jit.1} parent=1 // pred_check
      _
    $region11: #{_forward_jit.1} parent=1 // pred_check_branch
      %15 = sbr.rel (0) target = $region13
    $region12: #{_forward_jit.1} parent=1 // pred_region
      %17 = vsyncadd [#allocation3], 0
      %s18 = sshll.u32 %s2, 4
      %s19 = int_to_ptr.hbm [resolvable:$true] %s18
      %s20 = sshll.u32 [#allocation2], 4
      %s21 = int_to_ptr.vmem [resolvable:$true] %s20
      %26 = dma.hbm_to_vmem [thread:$0]  %s19, 6144, %s21, [#allocation3], 128, 128, 8
    $region13: #{_forward_jit.1} parent=1 // pred_fallthru
      _
    // Predicated region
    $region14: #{_forward_jit.1} parent=1 // pred_check
      _
    $region15: #{_forward_jit.1} parent=1 // pred_check_branch
      %28 = sbr.rel (0) target = $region17
    $region16: #{_forward_jit.1} parent=1 // pred_region
      %30 = dma.done [#allocation3], 6144
    $region17: #{_forward_jit.1} parent=1 // pred_fallthru
      _
    %v31 = vld [vmem:[%s0] sm:$0xff]
    %v32 = vld [vmem:[#allocation2] sm:$0xff]
    %v33 = vld [vmem:[#allocation2 + $0x8] sm:$0xff]
    %v34 = vld [vmem:[#allocation2 + $0x10] sm:$0xff]
    %v35 = vld [vmem:[#allocation2 + $0x18] sm:$0xff]
    %v36 = vld [vmem:[#allocation2 + $0x20] sm:$0xff]
    %v37 = vld [vmem:[#allocation2 + $0x28] sm:$0xff]
    %v38 = vld [vmem:[#allocation2 + $0x30] sm:$0xff]
    %v39 = vld [vmem:[#allocation2 + $0x38] sm:$0xff]
    %v40 = vld [vmem:[#allocation2 + $0x40] sm:$0xff]
    %v41 = vld [vmem:[#allocation2 + $0x48] sm:$0xff]
    %v42 = vld [vmem:[#allocation2 + $0x50] sm:$0xff]
    %v43 = vld [vmem:[#allocation2 + $0x58] sm:$0xff]
    %v44 = vld [vmem:[#allocation2 + $0x60] sm:$0xff]
    %v45 = vld [vmem:[#allocation2 + $0x68] sm:$0xff]
    %v46 = vld [vmem:[#allocation2 + $0x70] sm:$0xff]
    %v47 = vld [vmem:[#allocation2 + $0x78] sm:$0xff]
    %v48 = vld [vmem:[%s1] sm:$0x1]
    %v49 = vperm.slane %v48, 0
    %50 = vmatpush.msra.mxu0 %v47
    %51 = vmatpush.msra.mxu0 %v46
    %52 = vmatpush.msra.mxu0 %v45
    %53 = vmatpush.msra.mxu0 %v44
    %54 = vmatpush.msra.mxu0 %v43
    %55 = vmatpush.msra.mxu0 %v42
    %56 = vmatpush.msra.mxu0 %v41
    %57 = vmatpush.msra.mxu0 %v40
    %58 = vmatpush.msra.mxu0 %v39
    %59 = vmatpush.msra.mxu0 %v38
    %60 = vmatpush.msra.mxu0 %v37
    %61 = vmatpush.msra.mxu0 %v36
    %62 = vmatpush.msra.mxu0 %v35
    %63 = vmatpush.msra.mxu0 %v34
    %64 = vmatpush.msra.mxu0 %v33
    %65 = vmatpush.msra.mxu0 %v32
    %66 = vmatmul.f32.gmra.mxu0 %v31
    %v67 = vpop.f32.mrf.mxu0
    %v68 = vadd.f32 %v49, %v67
    %69 = vdwg.mxu0
    %v70 = vtanh.pop %v68
    %s71 = scalar_lea.vmem [#allocation2], 128
    %v72 = vld [vmem:[%s71] sm:$0xff]
    %v73 = vld [vmem:[%s71 + $0x8] sm:$0xff]
    %v74 = vld [vmem:[%s71 + $0x10] sm:$0xff]
    %v75 = vld [vmem:[%s71 + $0x18] sm:$0xff]
    %v76 = vld [vmem:[%s71 + $0x20] sm:$0xff]
    %v77 = vld [vmem:[%s71 + $0x28] sm:$0xff]
    %v78 = vld [vmem:[%s71 + $0x30] sm:$0xff]
    %v79 = vld [vmem:[%s71 + $0x38] sm:$0xff]
    %v80 = vld [vmem:[%s71 + $0x40] sm:$0xff]
    %v81 = vld [vmem:[%s71 + $0x48] sm:$0xff]
    %v82 = vld [vmem:[%s71 + $0x50] sm:$0xff]
    %v83 = vld [vmem:[%s71 + $0x58] sm:$0xff]
    %v84 = vld [vmem:[%s71 + $0x60] sm:$0xff]
    %v85 = vld [vmem:[%s71 + $0x68] sm:$0xff]
    %v86 = vld [vmem:[%s71 + $0x70] sm:$0xff]
    %v87 = vld [vmem:[%s71 + $0x78] sm:$0xff]
    %v88 = vld [vmem:[%s1 + $0x1] sm:$0x1]
    %v89 = vperm.slane %v88, 0
    %90 = vmatpush.msra.mxu0 %v87
    %91 = vmatpush.msra.mxu0 %v86
    %92 = vmatpush.msra.mxu0 %v85
    %93 = vmatpush.msra.mxu0 %v84
    %94 = vmatpush.msra.mxu0 %v83
    %95 = vmatpush.msra.mxu0 %v82
    %96 = vmatpush.msra.mxu0 %v81
    %97 = vmatpush.msra.mxu0 %v80
    %98 = vmatpush.msra.mxu0 %v79
    %99 = vmatpush.msra.mxu0 %v78
    %100 = vmatpush.msra.mxu0 %v77
    %101 = vmatpush.msra.mxu0 %v76
    %102 = vmatpush.msra.mxu0 %v75
    %103 = vmatpush.msra.mxu0 %v74
    %104 = vmatpush.msra.mxu0 %v73
    %105 = vmatpush.msra.mxu0 %v72
    %106 = vmatmul.f32.gmra.mxu0 %v70
    %v107 = vpop.f32.mrf.mxu0
    %v108 = vadd.f32 %v89, %v107
    %109 = vdwg.mxu0
    %v110 = vtanh.pop %v108
    %s111 = scalar_lea.vmem [#allocation2], 256
    %v112 = vld [vmem:[%s111] sm:$0xff]
    %v113 = vld [vmem:[%s111 + $0x8] sm:$0xff]
    %v114 = vld [vmem:[%s111 + $0x10] sm:$0xff]
    %v115 = vld [vmem:[%s111 + $0x18] sm:$0xff]
    %v116 = vld [vmem:[%s111 + $0x20] sm:$0xff]
    %v117 = vld [vmem:[%s111 + $0x28] sm:$0xff]
    %v118 = vld [vmem:[%s111 + $0x30] sm:$0xff]
    %v119 = vld [vmem:[%s111 + $0x38] sm:$0xff]
    %v120 = vld [vmem:[%s111 + $0x40] sm:$0xff]
    %v121 = vld [vmem:[%s111 + $0x48] sm:$0xff]
    %v122 = vld [vmem:[%s111 + $0x50] sm:$0xff]
    %v123 = vld [vmem:[%s111 + $0x58] sm:$0xff]
    %v124 = vld [vmem:[%s111 + $0x60] sm:$0xff]
    %v125 = vld [vmem:[%s111 + $0x68] sm:$0xff]
    %v126 = vld [vmem:[%s111 + $0x70] sm:$0xff]
    %v127 = vld [vmem:[%s111 + $0x78] sm:$0xff]
    %v128 = vld [vmem:[%s1 + $0x2] sm:$0x1]
    %v129 = vperm.slane %v128, 0
    %130 = vmatpush.msra.mxu0 %v127
    %131 = vmatpush.msra.mxu0 %v126
    %132 = vmatpush.msra.mxu0 %v125
    %133 = vmatpush.msra.mxu0 %v124
    %134 = vmatpush.msra.mxu0 %v123
    %135 = vmatpush.msra.mxu0 %v122
    %136 = vmatpush.msra.mxu0 %v121
    %137 = vmatpush.msra.mxu0 %v120
    %138 = vmatpush.msra.mxu0 %v119
    %139 = vmatpush.msra.mxu0 %v118
    %140 = vmatpush.msra.mxu0 %v117
    %141 = vmatpush.msra.mxu0 %v116
    %142 = vmatpush.msra.mxu0 %v115
    %143 = vmatpush.msra.mxu0 %v114
    %144 = vmatpush.msra.mxu0 %v113
    %145 = vmatpush.msra.mxu0 %v112
    %146 = vmatmul.f32.gmra.mxu0 %v110
    %v147 = vpop.f32.mrf.mxu0
    %v148 = vadd.f32 %v129, %v147
    %149 = vdwg.mxu0
    %v150 = vtanh.pop %v148
    %151 = vst [vmem:[#allocation5] sm:$0xff] %v150
    // Predicated region
    $region18: #{_forward_jit.1} parent=1 // pred_check
      _
    $region19: #{_forward_jit.1} parent=1 // pred_check_branch
      %153 = sbr.rel (0) target = $region21
    $region20: #{_forward_jit.1} parent=1 // pred_region
      %155 = vsyncadd [#allocation4], 0
      %s157 = sshll.u32 [#allocation5], 4
      %s158 = int_to_ptr.vmem [resolvable:$true] %s157
      %s159 = sshll.u32 %s3, 4
      %s160 = int_to_ptr.hbm [resolvable:$true] %s159
      %162 = dma.vmem_to_hbm [thread:$0]  %s158, 128, %s160, [#allocation4]
    $region21: #{_forward_jit.1} parent=1 // pred_fallthru
      _
    // Predicated region
    $region22: #{_forward_jit.1} parent=1 // pred_check
      _
    $region23: #{_forward_jit.1} parent=1 // pred_check_branch
      %164 = sbr.rel (0) target = $region25
    $region24: #{_forward_jit.1} parent=1 // pred_region
      %166 = dma.done [#allocation4], 128
    $region25: #{_forward_jit.1} parent=1 // pred_fallthru
      _
    %167 = vsyncpa [#allocation3], 1
    %168 = vsyncpa [#allocation4], 1

// kernel: _forward_jit.1
$region0: #{_forward_jit.1}
  #allocation0 [shape = 'u32[]', space=smem, size = 0x4, offset = 0x4, fixed_abs, tag = 'smem constant byte address 0x4 - core index']
  #allocation1 [shape = 'u32[72,128]{1,0:T(1,128)}', space=vmem, size = 0x9000, scoped, tag = 'internal scratch']
  %s0 = inlined_call_operand.vmem [shape: f32[8,128], index: 0, kind: input, shape index: {}]
  %s1 = inlined_call_operand.vmem [shape: f32[3,128], index: 1, kind: input, shape index: {}]
  %s2 = inlined_call_operand.hbm [shape: f32[3,128,128], index: 2, kind: input, shape index: {}]
  %s3 = inlined_call_operand.hbm [shape: f32[8,128], index: 3, kind: output, shape index: {}]
  %s4 = sld [smem:[#allocation0]]
  $region26: #{_forward_jit.1} parent=0
    _
  %s6 = ssub.s32 1, %s4
  %s7 = scalar_select 0, %s6, %s4
  $region1: #{_forward_jit.1} parent=0
    #allocation2 [shape = 'u8[196608]{0}', space=vmem, size = 0x30000, scoped, tag = 'input window, operand 2, single buffered']
    #allocation3 [shape = 's32[1]{0}', space=sflag, size = 0x4, scoped, tag = 'scoped memory for _forward_jit.1']
    #allocation4 [shape = 's32[1]{0}', space=sflag, size = 0x4, scoped, tag = 'scoped memory for _forward_jit.1']
    #allocation5 [shape = 'u8[4096]{0}', space=vmem, size = 0x1000, scoped, tag = 'output window, operand 0, single buffered']
    %8 = vsyncpa [#allocation3], 0
    %9 = vsyncpa [#allocation4], 0
    // Predicated region
    $region2: #{_forward_jit.1} parent=1 // pred_check
      _
    $region3: #{_forward_jit.1} parent=1 // pred_check_branch
      %11 = sbr.rel (0) target = $region5
    $region4: #{_forward_jit.1} parent=1 // pred_region
      _
    $region5: #{_forward_jit.1} parent=1 // pred_fallthru
      _
    // Predicated region
    $region6: #{_forward_jit.1} parent=1 // pred_check
      _
    $region7: #{_forward_jit.1} parent=1 // pred_check_branch
      %13 = sbr.rel (0) target = $region9
    $region8: #{_forward_jit.1} parent=1 // pred_region
      _
    $region9: #{_forward_jit.1} parent=1 // pred_fallthru
      _
    // Predicated region
    $region10: #{_forward_jit.1} parent=1 // pred_check
      _
    $region11: #{_forward_jit.1} parent=1 // pred_check_branch
      %15 = sbr.rel (0) target = $region13
    $region12: #{_forward_jit.1} parent=1 // pred_region
      %17 = vsyncadd [#allocation3], 0
      %s18 = sshll.u32 %s2, 4
      %s19 = int_to_ptr.hbm [resolvable:$true] %s18
      %s20 = sshll.u32 [#allocation2], 4
      %s21 = int_to_ptr.vmem [resolvable:$true] %s20
      %26 = dma.hbm_to_vmem [thread:$0]  %s19, 6144, %s21, [#allocation3], 128, 128, 8
    $region13: #{_forward_jit.1} parent=1 // pred_fallthru
      _
    // Predicated region
    $region14: #{_forward_jit.1} parent=1 // pred_check
      _
    $region15: #{_forward_jit.1} parent=1 // pred_check_branch
      %28 = sbr.rel (0) target = $region17
    $region16: #{_forward_jit.1} parent=1 // pred_region
      %30 = dma.done [#allocation3], 6144
    $region17: #{_forward_jit.1} parent=1 // pred_fallthru
      _
    %v31 = vld [vmem:[%s0] sm:$0xff]
    %v32 = vld [vmem:[#allocation2] sm:$0xff]
    %v33 = vld [vmem:[#allocation2 + $0x8] sm:$0xff]
    %v34 = vld [vmem:[#allocation2 + $0x10] sm:$0xff]
    %v35 = vld [vmem:[#allocation2 + $0x18] sm:$0xff]
    %v36 = vld [vmem:[#allocation2 + $0x20] sm:$0xff]
    %v37 = vld [vmem:[#allocation2 + $0x28] sm:$0xff]
    %v38 = vld [vmem:[#allocation2 + $0x30] sm:$0xff]
    %v39 = vld [vmem:[#allocation2 + $0x38] sm:$0xff]
    %v40 = vld [vmem:[#allocation2 + $0x40] sm:$0xff]
    %v41 = vld [vmem:[#allocation2 + $0x48] sm:$0xff]
    %v42 = vld [vmem:[#allocation2 + $0x50] sm:$0xff]
    %v43 = vld [vmem:[#allocation2 + $0x58] sm:$0xff]
    %v44 = vld [vmem:[#allocation2 + $0x60] sm:$0xff]
    %v45 = vld [vmem:[#allocation2 + $0x68] sm:$0xff]
    %v46 = vld [vmem:[#allocation2 + $0x70] sm:$0xff]
    %v47 = vld [vmem:[#allocation2 + $0x78] sm:$0xff]
    %v48 = vld [vmem:[%s1] sm:$0x1]
    %v49 = vperm.slane %v48, 0
    %50 = vmatpush.msra.mxu0 %v47
    %51 = vmatpush.msra.mxu0 %v46
    %52 = vmatpush.msra.mxu0 %v45
    %53 = vmatpush.msra.mxu0 %v44
    %54 = vmatpush.msra.mxu0 %v43
    %55 = vmatpush.msra.mxu0 %v42
    %56 = vmatpush.msra.mxu0 %v41
    %57 = vmatpush.msra.mxu0 %v40
    %58 = vmatpush.msra.mxu0 %v39
    %59 = vmatpush.msra.mxu0 %v38
    %60 = vmatpush.msra.mxu0 %v37
    %61 = vmatpush.msra.mxu0 %v36
    %62 = vmatpush.msra.mxu0 %v35
    %63 = vmatpush.msra.mxu0 %v34
    %64 = vmatpush.msra.mxu0 %v33
    %65 = vmatpush.msra.mxu0 %v32
    %66 = vmatmul.f32.gmra.mxu0 %v31
    %v67 = vpop.f32.mrf.mxu0
    %v68 = vadd.f32 %v49, %v67
    %69 = vdwg.mxu0
    %v70 = vtanh.pop %v68
    %s71 = scalar_lea.vmem [#allocation2], 128
    %v72 = vld [vmem:[%s71] sm:$0xff]
    %v73 = vld [vmem:[%s71 + $0x8] sm:$0xff]
    %v74 = vld [vmem:[%s71 + $0x10] sm:$0xff]
    %v75 = vld [vmem:[%s71 + $0x18] sm:$0xff]
    %v76 = vld [vmem:[%s71 + $0x20] sm:$0xff]
    %v77 = vld [vmem:[%s71 + $0x28] sm:$0xff]
    %v78 = vld [vmem:[%s71 + $0x30] sm:$0xff]
    %v79 = vld [vmem:[%s71 + $0x38] sm:$0xff]
    %v80 = vld [vmem:[%s71 + $0x40] sm:$0xff]
    %v81 = vld [vmem:[%s71 + $0x48] sm:$0xff]
    %v82 = vld [vmem:[%s71 + $0x50] sm:$0xff]
    %v83 = vld [vmem:[%s71 + $0x58] sm:$0xff]
    %v84 = vld [vmem:[%s71 + $0x60] sm:$0xff]
    %v85 = vld [vmem:[%s71 + $0x68] sm:$0xff]
    %v86 = vld [vmem:[%s71 + $0x70] sm:$0xff]
    %v87 = vld [vmem:[%s71 + $0x78] sm:$0xff]
    %v88 = vld [vmem:[%s1 + $0x1] sm:$0x1]
    %v89 = vperm.slane %v88, 0
    %90 = vmatpush.msra.mxu0 %v87
    %91 = vmatpush.msra.mxu0 %v86
    %92 = vmatpush.msra.mxu0 %v85
    %93 = vmatpush.msra.mxu0 %v84
    %94 = vmatpush.msra.mxu0 %v83
    %95 = vmatpush.msra.mxu0 %v82
    %96 = vmatpush.msra.mxu0 %v81
    %97 = vmatpush.msra.mxu0 %v80
    %98 = vmatpush.msra.mxu0 %v79
    %99 = vmatpush.msra.mxu0 %v78
    %100 = vmatpush.msra.mxu0 %v77
    %101 = vmatpush.msra.mxu0 %v76
    %102 = vmatpush.msra.mxu0 %v75
    %103 = vmatpush.msra.mxu0 %v74
    %104 = vmatpush.msra.mxu0 %v73
    %105 = vmatpush.msra.mxu0 %v72
    %106 = vmatmul.f32.gmra.mxu0 %v70
    %v107 = vpop.f32.mrf.mxu0
    %v108 = vadd.f32 %v89, %v107
    %109 = vdwg.mxu0
    %v110 = vtanh.pop %v108
    %s111 = scalar_lea.vmem [#allocation2], 256
    %v112 = vld [vmem:[%s111] sm:$0xff]
    %v113 = vld [vmem:[%s111 + $0x8] sm:$0xff]
    %v114 = vld [vmem:[%s111 + $0x10] sm:$0xff]
    %v115 = vld [vmem:[%s111 + $0x18] sm:$0xff]
    %v116 = vld [vmem:[%s111 + $0x20] sm:$0xff]
    %v117 = vld [vmem:[%s111 + $0x28] sm:$0xff]
    %v118 = vld [vmem:[%s111 + $0x30] sm:$0xff]
    %v119 = vld [vmem:[%s111 + $0x38] sm:$0xff]
    %v120 = vld [vmem:[%s111 + $0x40] sm:$0xff]
    %v121 = vld [vmem:[%s111 + $0x48] sm:$0xff]
    %v122 = vld [vmem:[%s111 + $0x50] sm:$0xff]
    %v123 = vld [vmem:[%s111 + $0x58] sm:$0xff]
    %v124 = vld [vmem:[%s111 + $0x60] sm:$0xff]
    %v125 = vld [vmem:[%s111 + $0x68] sm:$0xff]
    %v126 = vld [vmem:[%s111 + $0x70] sm:$0xff]
    %v127 = vld [vmem:[%s111 + $0x78] sm:$0xff]
    %v128 = vld [vmem:[%s1 + $0x2] sm:$0x1]
    %v129 = vperm.slane %v128, 0
    %130 = vmatpush.msra.mxu0 %v127
    %131 = vmatpush.msra.mxu0 %v126
    %132 = vmatpush.msra.mxu0 %v125
    %133 = vmatpush.msra.mxu0 %v124
    %134 = vmatpush.msra.mxu0 %v123
    %135 = vmatpush.msra.mxu0 %v122
    %136 = vmatpush.msra.mxu0 %v121
    %137 = vmatpush.msra.mxu0 %v120
    %138 = vmatpush.msra.mxu0 %v119
    %139 = vmatpush.msra.mxu0 %v118
    %140 = vmatpush.msra.mxu0 %v117
    %141 = vmatpush.msra.mxu0 %v116
    %142 = vmatpush.msra.mxu0 %v115
    %143 = vmatpush.msra.mxu0 %v114
    %144 = vmatpush.msra.mxu0 %v113
    %145 = vmatpush.msra.mxu0 %v112
    %146 = vmatmul.f32.gmra.mxu0 %v110
    %v147 = vpop.f32.mrf.mxu0
    %v148 = vadd.f32 %v129, %v147
    %149 = vdwg.mxu0
    %v150 = vtanh.pop %v148
    %151 = vst [vmem:[#allocation5] sm:$0xff] %v150
    // Predicated region
    $region18: #{_forward_jit.1} parent=1 // pred_check
      _
    $region19: #{_forward_jit.1} parent=1 // pred_check_branch
      %153 = sbr.rel (0) target = $region21
    $region20: #{_forward_jit.1} parent=1 // pred_region
      %155 = vsyncadd [#allocation4], 0
      %s157 = sshll.u32 [#allocation5], 4
      %s158 = int_to_ptr.vmem [resolvable:$true] %s157
      %s159 = sshll.u32 %s3, 4
      %s160 = int_to_ptr.hbm [resolvable:$true] %s159
      %162 = dma.vmem_to_hbm [thread:$0]  %s158, 128, %s160, [#allocation4]
    $region21: #{_forward_jit.1} parent=1 // pred_fallthru
      _
    // Predicated region
    $region22: #{_forward_jit.1} parent=1 // pred_check
      _
    $region23: #{_forward_jit.1} parent=1 // pred_check_branch
      %164 = sbr.rel (0) target = $region25
    $region24: #{_forward_jit.1} parent=1 // pred_region
      %166 = dma.done [#allocation4], 128
    $region25: #{_forward_jit.1} parent=1 // pred_fallthru
      _
    %167 = vsyncpa [#allocation3], 1
    %168 = vsyncpa [#allocation4], 1

</llo_original>
